<compile_context>
chip_gen: v7x
topology: tpu7x:2x2x1
jax: 0.10.0
libtpu: 0.0.40
codegen_flags: <defaults>
</compile_context>

<pallas_src>
import functools

import jax
import jax.numpy as jnp
from jax.experimental import pallas as pl
from jax.experimental.pallas import tpu as pltpu

EPS = 1e-5          # nn.InstanceNorm2d default
NEG_SLOPE = 0.2     # nn.LeakyReLU(0.2)


def _round_up(a, b):
    return (a + b - 1) // b * b


def _kernel_cached(p_ref, w_ref, o_ref, ycache_ref, sum_ref, ssq_ref, *,
                   p_real, pt_size):
    # p_ref   : (1, K, Pt)        bf16 patch tile (lane-dense in P)
    # w_ref   : (C_out_blk, K)    bf16 weight chunk (resident)
    # o_ref   : (1, C_out_blk, Pt) output tile
    # ycache  : (C_out_blk, P_pad) bf16 conv-output cache for this (n, co)
    # sum/ssq : (C_out_blk, 1)    f32 running stats; reused as mean/scale in ph 1
    ph = pl.program_id(2)
    t = pl.program_id(3)
    off = pl.multiple_of(t * pt_size, pt_size)

    @pl.when((ph == 0) & (t == 0))
    def _():
        sum_ref[...] = jnp.zeros_like(sum_ref)
        ssq_ref[...] = jnp.zeros_like(ssq_ref)

    @pl.when(ph == 0)
    def _():
        # Conv2d(kernel=2, stride=2, bias=False) as an MXU matmul, f32 accumulate.
        y = jnp.dot(w_ref[...], p_ref[0],
                    preferred_element_type=jnp.float32)      # (C_out_blk, Pt)
        sum_ref[...] += jnp.sum(y, axis=-1, keepdims=True)
        ssq_ref[...] += jnp.sum(y * y, axis=-1, keepdims=True)
        ycache_ref[:, pl.ds(off, pt_size)] = y.astype(ycache_ref.dtype)

    @pl.when((ph == 1) & (t == 0))
    def _():
        # Hoisted: compute mean and rsqrt(var+eps) once, reuse for all tiles.
        inv_p = jnp.float32(1.0 / p_real)
        mean = sum_ref[...] * inv_p
        var = jnp.maximum(ssq_ref[...] * inv_p - mean * mean, 0.0)
        sum_ref[...] = mean                                   # now holds mean
        ssq_ref[...] = jax.lax.rsqrt(var + EPS)               # now holds scale

    @pl.when(ph == 1)
    def _():
        y = ycache_ref[:, pl.ds(off, pt_size)].astype(jnp.float32)
        y_n = (y - sum_ref[...]) * ssq_ref[...]
        out = jnp.where(y_n >= 0, y_n, NEG_SLOPE * y_n)       # LeakyReLU(0.2)
        o_ref[0] = out.astype(o_ref.dtype)


def _kernel_stream(p_ref, w_ref, o_ref, sum_ref, ssq_ref, *, p_real):
    # Fallback (y-cache does not fit VMEM): phase 1 re-reads patches and
    # recomputes the cheap matmul.  Output still written only in phase 1.
    ph = pl.program_id(2)
    t = pl.program_id(3)

    y = jnp.dot(w_ref[...], p_ref[0], preferred_element_type=jnp.float32)

    @pl.when((ph == 0) & (t == 0))
    def _():
        sum_ref[...] = jnp.zeros_like(sum_ref)
        ssq_ref[...] = jnp.zeros_like(ssq_ref)

    @pl.when(ph == 0)
    def _():
        sum_ref[...] += jnp.sum(y, axis=-1, keepdims=True)
        ssq_ref[...] += jnp.sum(y * y, axis=-1, keepdims=True)

    @pl.when((ph == 1) & (t == 0))
    def _():
        inv_p = jnp.float32(1.0 / p_real)
        mean = sum_ref[...] * inv_p
        var = jnp.maximum(ssq_ref[...] * inv_p - mean * mean, 0.0)
        sum_ref[...] = mean
        ssq_ref[...] = jax.lax.rsqrt(var + EPS)

    @pl.when(ph == 1)
    def _():
        y_n = (y - sum_ref[...]) * ssq_ref[...]
        o_ref[0] = jnp.where(y_n >= 0, y_n, NEG_SLOPE * y_n).astype(o_ref.dtype)


def unet_down(x, weight, *, matmul_dtype=jnp.bfloat16, out_dtype=None,
              co_chunks=1):
    """x: (N, C_in, H, W); weight: (C_out, C_in, 2, 2) -- PyTorch OIHW layout.

    co_chunks: split C_out into this many parallel grid blocks (set 2 on v7x at
    batch 1 so the second TensorCore has work; keep 1 on single-TC v5e/v6e).
    """
    N, C_in, H, W = x.shape
    C_out = weight.shape[0]
    assert weight.shape == (C_out, C_in, 2, 2)
    assert H % 2 == 0 and W % 2 == 0
    out_dtype = x.dtype if out_dtype is None else out_dtype

    Ho, Wo = H // 2, W // 2
    P = Ho * Wo
    K = C_in * 2 * 2

    assert C_out % co_chunks == 0
    co_blk = C_out // co_chunks
    assert co_chunks == 1 or co_blk % 8 == 0, "C_out chunk must be sublane aligned"

    # ---- Patch extraction pre-pass (XLA), lane-dense (N, K, P), K = (C_in,kh,kw).
    # TODO(synk): form the 2x2/stride-2 patches inside the kernel from raw NCHW
    # blocks (strided pl.ds row/column deinterleave) to remove this extra HBM
    # read+write of x on a bandwidth-bound op.
    xp = x.astype(matmul_dtype).reshape(N, C_in, Ho, 2, Wo, 2)
    xp = jnp.transpose(xp, (0, 1, 3, 5, 2, 4))               # (N, C_in, 2, 2, Ho, Wo)
    patches = xp.reshape(N, K, P)
    w_mat = weight.astype(matmul_dtype).reshape(C_out, K)

    # bf16 sublane packing: pad the contraction dim to a multiple of 16
    # (zero rows contribute nothing to the matmul or the statistics).
    K_pad = max(16, _round_up(K, 16))
    if K_pad != K:
        patches = jnp.pad(patches, ((0, 0), (0, K_pad - K), (0, 0)))
        w_mat = jnp.pad(w_mat, ((0, 0), (0, K_pad - K)))

    # ---- VMEM budget & tiling (sized per-generation: 128 MiB v5e/v6e, 64 MiB v7x).
    mm_isz = jnp.dtype(matmul_dtype).itemsize
    out_isz = jnp.dtype(out_dtype).itemsize
    try:
        vmem_cap = int(pltpu.get_tpu_info().vmem_capacity_bytes)
    except Exception:
        vmem_cap = 64 << 20                                   # conservative default
    vmem_limit = min(int(vmem_cap * 3 // 4), 112 << 20)
    tile_budget = vmem_limit - (4 << 20)                      # headroom

    pt_full = _round_up(P, 128)

    def _vmem_bytes(pt, with_cache):
        p_pad = _round_up(P, pt)
        b = (2 * K_pad * pt * mm_isz            # patch tile, double-buffered
             + 2 * co_blk * pt * out_isz        # output tile, double-buffered
             + 2 * co_blk * K_pad * mm_isz)     # resident weight chunk
        if with_cache:
            b += co_blk * p_pad * mm_isz        # y-cache scratch
        return b

    use_cache, Pt = True, None
    for cand in (4096, 2048, 1024, 512, 256, 128):
        c = min(cand, pt_full)
        if _vmem_bytes(c, True) <= tile_budget:
            Pt = c
            break
    if Pt is None:
        use_cache = False
        for cand in (4096, 2048, 1024, 512, 256, 128):
            c = min(cand, pt_full)
            if _vmem_bytes(c, False) <= tile_budget:
                Pt = c
                break
        if Pt is None:
            Pt = 128

    P_pad = _round_up(P, Pt)
    n_pt = P_pad // Pt
    if P_pad != P:
        # Zero patches contribute 0 to sum/sumsq (no bias) -> stats stay exact.
        patches = jnp.pad(patches, ((0, 0), (0, 0), (0, P_pad - P)))

    last_t = n_pt - 1
    if use_cache:
        # Phase 1 needs no patch data: freeze the block index at the last tile
        # so no new DMA is issued while normalizing from the VMEM y-cache.
        patch_idx = lambda n, co, ph, t: (n, 0, t * (1 - ph) + last_t * ph)
    else:
        patch_idx = lambda n, co, ph, t: (n, 0, t)
    w_idx = lambda n, co, ph, t: (co, 0)
    # Phase 0 revisits output block (n, co, 0) without storing -> never flushed;
    # only the normalized phase-1 tiles are ever written back to HBM.
    out_idx = lambda n, co, ph, t: (n, co, t * ph)

    scratch = []
    if use_cache:
        scratch.append(pltpu.VMEM((co_blk, P_pad), matmul_dtype))
    scratch += [pltpu.VMEM((co_blk, 1), jnp.float32),
                pltpu.VMEM((co_blk, 1), jnp.float32)]

    if use_cache:
        kernel = functools.partial(_kernel_cached, p_real=float(P), pt_size=Pt)
    else:
        kernel = functools.partial(_kernel_stream, p_real=float(P))

    mm_passes = 1 if use_cache else 2
    cost = pl.CostEstimate(
        flops=int(2 * mm_passes * N * C_out * K_pad * P_pad),
        transcendentals=int(N * C_out),
        bytes_accessed=int(mm_passes * N * K_pad * P_pad * mm_isz
                           + C_out * K_pad * mm_isz
                           + N * C_out * P_pad * out_isz),
    )

    out = pl.pallas_call(
        kernel,
        out_shape=jax.ShapeDtypeStruct((N, C_out, P_pad), out_dtype),
        grid_spec=pltpu.PrefetchScalarGridSpec(
            num_scalar_prefetch=0,
            grid=(N, co_chunks, 2, n_pt),       # (sample, C_out chunk, phase, P tile)
            in_specs=[
                pl.BlockSpec((1, K_pad, Pt), patch_idx),
                pl.BlockSpec((co_blk, K_pad), w_idx),
            ],
            out_specs=pl.BlockSpec((1, co_blk, Pt), out_idx),
            scratch_shapes=scratch,
        ),
        compiler_params=pltpu.CompilerParams(
            dimension_semantics=("parallel", "parallel", "arbitrary", "arbitrary"),
            vmem_limit_bytes=vmem_limit),
        cost_estimate=cost,
    )(patches, w_mat)

    # Lane-dense output reshapes straight back to NCHW -- no transpose needed.
    return out[:, :, :P].reshape(N, C_out, Ho, Wo)


if __name__ == "__main__":
    key = jax.random.PRNGKey(0)
    kx, kw = jax.random.split(key)

    # Small shapes consistent with UNetDown(in_size=4, out_size=8)
    N, C_in, H, W = 2, 4, 16, 16
    C_out = 8

    x = jax.random.normal(kx, (N, C_in, H, W), dtype=jnp.float32)
    weight = 0.1 * jax.random.normal(kw, (C_out, C_in, 2, 2), dtype=jnp.float32)

    y = unet_down(x, weight)
    jax.block_until_ready(y)
    assert y.shape == (N, C_out, H // 2, W // 2)

    # Pure-JAX f32 reference (conv -> instance norm -> leaky relu) sanity check.
    def ref(x, w):
        yc = jax.lax.conv_general_dilated(
            x, w, window_strides=(2, 2), padding="VALID",
            dimension_numbers=("NCHW", "OIHW", "NCHW"))
        mean = yc.mean(axis=(2, 3), keepdims=True)
        var = ((yc - mean) ** 2).mean(axis=(2, 3), keepdims=True)
        yn = (yc - mean) * jax.lax.rsqrt(var + EPS)
        return jnp.where(yn >= 0, yn, NEG_SLOPE * yn)

    max_err = float(jnp.max(jnp.abs(y - ref(x, weight))))
    assert max_err < 0.1, f"max abs err too large: {max_err}"
    print("KERNEL_OK")
</pallas_src>

<mosaic_0001>
module attributes {stable_mosaic.version = 11 : i64} {
  func.func @_kernel_cached(%arg0: i32, %arg1: i32, %arg2: i32, %arg3: i32, %arg4: memref<1x16x128xbf16, #tpu.memory_space<vmem>>, %arg5: memref<8x16xbf16, #tpu.memory_space<vmem>>, %arg6: memref<1x8x128xf32, #tpu.memory_space<vmem>>, %arg7: memref<8x128xbf16, #tpu.memory_space<vmem>>, %arg8: memref<8x1xf32, #tpu.memory_space<vmem>>, %arg9: memref<8x1xf32, #tpu.memory_space<vmem>>) attributes {dimension_semantics = [#tpu.dimension_semantics<parallel>, #tpu.dimension_semantics<parallel>, #tpu.dimension_semantics<arbitrary>, #tpu.dimension_semantics<arbitrary>], iteration_bounds = array<i64: 2, 1, 2, 1>, scalar_prefetch = 0 : i64, scratch_operands = 3 : i64, tpu.core_type = #tpu.core_type<tc>, window_params = [{transform_indices = @transform_0, window_bounds = array<i64: 1, 16, 128>}, {transform_indices = @transform_1, window_bounds = array<i64: 8, 16>}, {transform_indices = @transform_2, window_bounds = array<i64: 1, 8, 128>}]} {
    %c128_i32 = arith.constant 128 : i32
    %0 = arith.muli %arg3, %c128_i32 : i32
    %1 = tpu.assume_multiple %0, 128 : i32
    %c0_i32 = arith.constant 0 : i32
    %2 = arith.cmpi eq, %arg2, %c0_i32 : i32
    %c0_i32_0 = arith.constant 0 : i32
    %3 = arith.cmpi eq, %arg3, %c0_i32_0 : i32
    %4 = arith.andi %2, %3 : i1
    %5 = arith.extui %4 : i1 to i32
    %c0_i32_1 = arith.constant 0 : i32
    %6 = arith.cmpi ne, %5, %c0_i32_1 : i32
    scf.if %6 {
      %cst = arith.constant 0.000000e+00 : f32
      %18 = vector.broadcast %cst : f32 to vector<8x1xf32>
      %c0 = arith.constant 0 : index
      %c0_8 = arith.constant 0 : index
      %19 = vector.load %arg8[%c0, %c0_8] : memref<8x1xf32, #tpu.memory_space<vmem>>, vector<8x1xf32>
      tpu.vector_store %arg8[%c0, %c0_8], %18 {strides = array<i32>} : memref<8x1xf32, #tpu.memory_space<vmem>>, vector<8x1xf32>,
      %cst_9 = arith.constant 0.000000e+00 : f32
      %20 = vector.broadcast %cst_9 : f32 to vector<8x1xf32>
      %c0_10 = arith.constant 0 : index
      %c0_11 = arith.constant 0 : index
      %21 = vector.load %arg9[%c0_10, %c0_11] : memref<8x1xf32, #tpu.memory_space<vmem>>, vector<8x1xf32>
      tpu.vector_store %arg9[%c0_10, %c0_11], %20 {strides = array<i32>} : memref<8x1xf32, #tpu.memory_space<vmem>>, vector<8x1xf32>,
    } else {
    }
    %c0_i32_2 = arith.constant 0 : i32
    %7 = arith.cmpi eq, %arg2, %c0_i32_2 : i32
    %8 = arith.extui %7 : i1 to i32
    %c0_i32_3 = arith.constant 0 : i32
    %9 = arith.cmpi ne, %8, %c0_i32_3 : i32
    scf.if %9 {
      %c0 = arith.constant 0 : index
      %c0_8 = arith.constant 0 : index
      %18 = vector.load %arg5[%c0, %c0_8] : memref<8x16xbf16, #tpu.memory_space<vmem>>, vector<8x16xbf16>
      %c0_9 = arith.constant 0 : index
      %c0_10 = arith.constant 0 : index
      %c0_11 = arith.constant 0 : index
      %19 = vector.load %arg4[%c0_9, %c0_10, %c0_11] : memref<1x16x128xbf16, #tpu.memory_space<vmem>>, vector<1x16x128xbf16>
      %20 = vector.shape_cast %19 : vector<1x16x128xbf16> to vector<16x128xbf16>
      %cst = arith.constant dense<0.000000e+00> : vector<8x128xf32>
      %21 = tpu.matmul %18, %20, %cst {dimension_numbers = #tpu.dot_dimension_numbers<[1], [0], [0], [1], [0, 0, 1, 1], [], []>} : vector<8x16xbf16>, vector<16x128xbf16>, vector<8x128xf32> -> vector<8x128xf32>
      %c0_12 = arith.constant 0 : index
      %c0_13 = arith.constant 0 : index
      %22 = vector.load %arg8[%c0_12, %c0_13] : memref<8x1xf32, #tpu.memory_space<vmem>>, vector<8x1xf32>
      %cst_14 = arith.constant dense<0.000000e+00> : vector<8xf32>
      %23 = vector.multi_reduction <add>, %21, %cst_14 [1] : vector<8x128xf32> to vector<8xf32>
      %24 = vector.shape_cast %23 : vector<8xf32> to vector<8x1xf32>
      %25 = arith.addf %22, %24 : vector<8x1xf32>
      %c0_15 = arith.constant 0 : index
      %c0_16 = arith.constant 0 : index
      %26 = vector.load %arg8[%c0_15, %c0_16] : memref<8x1xf32, #tpu.memory_space<vmem>>, vector<8x1xf32>
      tpu.vector_store %arg8[%c0_15, %c0_16], %25 {strides = array<i32>} : memref<8x1xf32, #tpu.memory_space<vmem>>, vector<8x1xf32>,
      %c0_17 = arith.constant 0 : index
      %c0_18 = arith.constant 0 : index
      %27 = vector.load %arg9[%c0_17, %c0_18] : memref<8x1xf32, #tpu.memory_space<vmem>>, vector<8x1xf32>
      %28 = arith.mulf %21, %21 : vector<8x128xf32>
      %cst_19 = arith.constant dense<0.000000e+00> : vector<8xf32>
      %29 = vector.multi_reduction <add>, %28, %cst_19 [1] : vector<8x128xf32> to vector<8xf32>
      %30 = vector.shape_cast %29 : vector<8xf32> to vector<8x1xf32>
      %31 = arith.addf %27, %30 : vector<8x1xf32>
      %c0_20 = arith.constant 0 : index
      %c0_21 = arith.constant 0 : index
      %32 = vector.load %arg9[%c0_20, %c0_21] : memref<8x1xf32, #tpu.memory_space<vmem>>, vector<8x1xf32>
      tpu.vector_store %arg9[%c0_20, %c0_21], %31 {strides = array<i32>} : memref<8x1xf32, #tpu.memory_space<vmem>>, vector<8x1xf32>,
      %33 = arith.truncf %21 : vector<8x128xf32> to vector<8x128xbf16>
      %c0_22 = arith.constant 0 : index
      %34 = arith.index_cast %1 : i32 to index
      %35 = vector.load %arg7[%c0_22, %34] : memref<8x128xbf16, #tpu.memory_space<vmem>>, vector<8x128xbf16>
      tpu.vector_store %arg7[%c0_22, %34], %33 {strides = array<i32>} : memref<8x128xbf16, #tpu.memory_space<vmem>>, vector<8x128xbf16>,
    } else {
    }
    %c1_i32 = arith.constant 1 : i32
    %10 = arith.cmpi eq, %arg2, %c1_i32 : i32
    %c0_i32_4 = arith.constant 0 : i32
    %11 = arith.cmpi eq, %arg3, %c0_i32_4 : i32
    %12 = arith.andi %10, %11 : i1
    %13 = arith.extui %12 : i1 to i32
    %c0_i32_5 = arith.constant 0 : i32
    %14 = arith.cmpi ne, %13, %c0_i32_5 : i32
    scf.if %14 {
      %c0 = arith.constant 0 : index
      %c0_8 = arith.constant 0 : index
      %18 = vector.load %arg8[%c0, %c0_8] : memref<8x1xf32, #tpu.memory_space<vmem>>, vector<8x1xf32>
      %cst = arith.constant 1.562500e-02 : f32
      %19 = vector.broadcast %cst : f32 to vector<8x1xf32>
      %20 = arith.mulf %18, %19 : vector<8x1xf32>
      %c0_9 = arith.constant 0 : index
      %c0_10 = arith.constant 0 : index
      %21 = vector.load %arg9[%c0_9, %c0_10] : memref<8x1xf32, #tpu.memory_space<vmem>>, vector<8x1xf32>
      %cst_11 = arith.constant 1.562500e-02 : f32
      %22 = vector.broadcast %cst_11 : f32 to vector<8x1xf32>
      %23 = arith.mulf %21, %22 : vector<8x1xf32>
      %24 = arith.mulf %20, %20 : vector<8x1xf32>
      %25 = arith.subf %23, %24 : vector<8x1xf32>
      %cst_12 = arith.constant 0.000000e+00 : f32
      %26 = vector.broadcast %cst_12 : f32 to vector<8x1xf32>
      %27 = arith.maximumf %25, %26 : vector<8x1xf32>
      %c0_13 = arith.constant 0 : index
      %c0_14 = arith.constant 0 : index
      %28 = vector.load %arg8[%c0_13, %c0_14] : memref<8x1xf32, #tpu.memory_space<vmem>>, vector<8x1xf32>
      tpu.vector_store %arg8[%c0_13, %c0_14], %20 {strides = array<i32>} : memref<8x1xf32, #tpu.memory_space<vmem>>, vector<8x1xf32>,
      %cst_15 = arith.constant 9.99999974E-6 : f32
      %29 = vector.broadcast %cst_15 : f32 to vector<8x1xf32>
      %30 = arith.addf %27, %29 : vector<8x1xf32>
      %31 = math.rsqrt %30 : vector<8x1xf32>
      %c0_16 = arith.constant 0 : index
      %c0_17 = arith.constant 0 : index
      %32 = vector.load %arg9[%c0_16, %c0_17] : memref<8x1xf32, #tpu.memory_space<vmem>>, vector<8x1xf32>
      tpu.vector_store %arg9[%c0_16, %c0_17], %31 {strides = array<i32>} : memref<8x1xf32, #tpu.memory_space<vmem>>, vector<8x1xf32>,
    } else {
    }
    %c1_i32_6 = arith.constant 1 : i32
    %15 = arith.cmpi eq, %arg2, %c1_i32_6 : i32
    %16 = arith.extui %15 : i1 to i32
    %c0_i32_7 = arith.constant 0 : i32
    %17 = arith.cmpi ne, %16, %c0_i32_7 : i32
    scf.if %17 {
      %c0 = arith.constant 0 : index
      %18 = arith.index_cast %1 : i32 to index
      %19 = vector.load %arg7[%c0, %18] : memref<8x128xbf16, #tpu.memory_space<vmem>>, vector<8x128xbf16>
      %20 = arith.extf %19 : vector<8x128xbf16> to vector<8x128xf32>
      %c0_8 = arith.constant 0 : index
      %c0_9 = arith.constant 0 : index
      %21 = vector.load %arg8[%c0_8, %c0_9] : memref<8x1xf32, #tpu.memory_space<vmem>>, vector<8x1xf32>
      %22 = vector.broadcast %21 : vector<8x1xf32> to vector<8x128xf32>
      %23 = arith.subf %20, %22 : vector<8x128xf32>
      %c0_10 = arith.constant 0 : index
      %c0_11 = arith.constant 0 : index
      %24 = vector.load %arg9[%c0_10, %c0_11] : memref<8x1xf32, #tpu.memory_space<vmem>>, vector<8x1xf32>
      %25 = vector.broadcast %24 : vector<8x1xf32> to vector<8x128xf32>
      %26 = arith.mulf %23, %25 : vector<8x128xf32>
      %cst = arith.constant 0.000000e+00 : f32
      %27 = vector.broadcast %cst : f32 to vector<8x128xf32>
      %28 = arith.cmpf oge, %26, %27 : vector<8x128xf32>
      %cst_12 = arith.constant 2.000000e-01 : f32
      %29 = vector.broadcast %cst_12 : f32 to vector<8x128xf32>
      %30 = arith.mulf %29, %26 : vector<8x128xf32>
      %31 = arith.select %28, %26, %30 : vector<8x128xi1>, vector<8x128xf32>
      %c0_13 = arith.constant 0 : index
      %c0_14 = arith.constant 0 : index
      %c0_15 = arith.constant 0 : index
      %32 = vector.load %arg6[%c0_13, %c0_14, %c0_15] : memref<1x8x128xf32, #tpu.memory_space<vmem>>, vector<1x8x128xf32>
      %33 = vector.shape_cast %32 : vector<1x8x128xf32> to vector<8x128xf32>
      %34 = vector.shape_cast %31 : vector<8x128xf32> to vector<1x8x128xf32>
      tpu.vector_store %arg6[%c0_13, %c0_14, %c0_15], %34 {strides = array<i32>} : memref<1x8x128xf32, #tpu.memory_space<vmem>>, vector<1x8x128xf32>,
    } else {
    }
    return
  }
  func.func @transform_0(%arg0: i32, %arg1: i32, %arg2: i32, %arg3: i32) -> (i32, i32, i32) {
    %c1_i32 = arith.constant 1 : i32
    %0 = arith.subi %c1_i32, %arg2 : i32
    %1 = arith.muli %arg3, %0 : i32
    %c0_i32 = arith.constant 0 : i32
    %2 = arith.muli %c0_i32, %arg2 : i32
    %3 = arith.addi %1, %2 : i32
    %c0_i32_0 = arith.constant 0 : i32
    %c0_i32_1 = arith.constant 0 : i32
    return %arg0, %c0_i32_0, %3 : i32, i32, i32
  }
  func.func @transform_1(%arg0: i32, %arg1: i32, %arg2: i32, %arg3: i32) -> (i32, i32) {
    %c0_i32 = arith.constant 0 : i32
    %c0_i32_0 = arith.constant 0 : i32
    return %arg1, %c0_i32 : i32, i32
  }
  func.func @transform_2(%arg0: i32, %arg1: i32, %arg2: i32, %arg3: i32) -> (i32, i32, i32) {
    %0 = arith.muli %arg3, %arg2 : i32
    %c0_i32 = arith.constant 0 : i32
    return %arg0, %arg1, %0 : i32, i32, i32
  }
}

</mosaic_0001>

<llo_original>
// kernel: tpu_custom_call.1
$region0: #{tpu_custom_call.1}
  #allocation0 [shape = 'u32[]', space=smem, size = 0x4, offset = 0x4, fixed_abs, tag = 'smem constant byte address 0x4 - core index']
  #allocation1 [shape = 'u32[144,128]{1,0:T(1,128)}', space=vmem, size = 0x12000, scoped, tag = 'internal scratch']
  #allocation2 [shape = 'bf16[8,128]{1,0:T(8,128)(2,1)}', space=vmem, size = 0x800, scoped, tag = 'scratch operand']
  #allocation3 [shape = 'f32[8,1]{1,0:T(8,128)}', space=vmem, size = 0x1000, scoped, tag = 'scratch operand']
  #allocation4 [shape = 'f32[8,1]{1,0:T(8,128)}', space=vmem, size = 0x1000, scoped, tag = 'scratch operand']
  %s0 = inlined_call_operand.hbm [shape: bf16[2,16,128], index: 0, kind: input, shape index: {}]
  %s1 = inlined_call_operand.hbm [shape: bf16[8,16], index: 1, kind: input, shape index: {}]
  %s2 = inlined_call_operand.hbm [shape: f32[2,8,128], index: 2, kind: output, shape index: {}]
  %s3 = sld [smem:[#allocation0]]
  $region65: #{tpu_custom_call.1} parent=0
    _
  %s5 = ssub.s32 1, %s3
  %s6 = scalar_select 0, %s5, %s3
  $region1: #{tpu_custom_call.1} parent=0
    #allocation5 [shape = 'u8[8192]{0}', space=vmem, size = 0x2000, scoped, tag = 'input window, operand 0']
    #allocation6 [shape = 's32[2]{0}', space=sflag, size = 0x8, scoped, tag = 'scoped memory for tpu_custom_call.1']
    #allocation7 [shape = 's32[2]{0}', space=sflag, size = 0x8, scoped, tag = 'scoped memory for tpu_custom_call.1']
    #allocation8 [shape = 'u8[2048]{0}', space=vmem, size = 0x800, scoped, tag = 'input window, operand 1, single buffered']
    #allocation9 [shape = 's32[1]{0}', space=sflag, size = 0x4, scoped, tag = 'scoped memory for tpu_custom_call.1']
    #allocation10 [shape = 'u8[8192]{0}', space=vmem, size = 0x2000, scoped, tag = 'output window, operand 0']
    %7 = vsyncpa [#allocation6], 0
    %s8 = scalar_lea.sflag [#allocation6], 1
    %9 = vsyncpa %s8, 0
    %10 = vsyncpa [#allocation9], 0
    %11 = vsyncpa [#allocation7], 0
    %s12 = scalar_lea.sflag [#allocation7], 1
    %13 = vsyncpa %s12, 0
    loop: start=0, step=1, limit=6
    $region2: #{tpu_custom_call.1} parent=1 // loop_pre_header
      _
    $region3: #{tpu_custom_call.1} parent=1 // loop_header
      %s15 = sphi 0, %s19
      %p16 = scmp.ge.s32.totalorder %s15, 6
      %s22 = sphi 0, %s48
      %s23 = sphi 0, %s44
      %s24 = sphi 0, %s40
      %s25 = sphi 0, %s36
      %s26 = sphi 0, %s22
      %s27 = sphi 0, %s23
      %s28 = sphi 0, %s24
      %s29 = sphi 0, %s25
      %s30 = sphi 0, %s26
      %s31 = sphi 0, %s27
      %s32 = sphi 0, %s28
      %s33 = sphi 0, %s29
      %s57 = sphi 0, %s59
      %s60 = sphi 0, %s57
      %s61 = sphi 0, %s60
      %s77 = sphi 0, %s61
      %s83 = sphi 0, %s85
      %s86 = sphi 0, %s83
      %s87 = sphi 0, %s86
      %s103 = sphi 0, %s87
      %s115 = sphi 0, %s117
      %s118 = sphi 0, %s115
      %s119 = sphi 0, %s118
      %s135 = sphi 0, %s119
    $region4: #{tpu_custom_call.1} parent=1 // loop_header_branch
      %18 = sbr.rel (%p16) target = $region8
    $region5: #{tpu_custom_call.1} parent=1 // loop_body
      %s20 = ssub.s32 %s15, 1
      %s21 = ssub.s32 %s15, 2
      %s34 = sadd.s32 1, %s25
      %p35 = scmp.ge.s32.totalorder %s34, 1
      %s36 = scalar_select %p35, 0, %s34
      %s37 = sadd.s32 1, %s24
      %s38 = scalar_select %p35, %s37, %s24
      %p39 = scmp.ge.s32.totalorder %s38, 2
      %s40 = scalar_select %p39, 0, %s38
      %s41 = sadd.s32 1, %s23
      %s42 = scalar_select %p39, %s41, %s23
      %p43 = scmp.ge.s32.totalorder %s42, 1
      %s44 = scalar_select %p43, 0, %s42
      %s45 = sadd.s32 1, %s22
      %s46 = scalar_select %p43, %s45, %s22
      %p47 = scmp.ge.s32.totalorder %s46, 2
      %s48 = scalar_select %p47, 0, %s46
      %s49 = ssub.s32 1, %s24
      %s50 = smul.u32 %s25, %s49
      %s51 = ssub.s32 1, %s40
      %s52 = smul.u32 %s36, %s51
      %s53 = ssub.s32 %s22, %s48
      %s54 = ssub.s32 %s50, %s52
      %s55 = sor.u32 %s53, %s54
      %p56 = scmp.eq.s32.totalorder %s55, 0
      %s58 = sadd.s32 %s57, 1
      %s59 = scalar_select %p56, %s57, %s58
      %p62 = pneg %p56
      %p63 = scmp.eq.s32.totalorder %s15, 3
      %p64 = por %p62, %p63
      %p65 = scmp.ne.s32.totalorder %s57, %s60
      %p66 = scmp.eq.s32.totalorder %s15, 0
      %p67 = por %p65, %p66
      %p68 = scmp.ne.s32.totalorder %s57, %s60
      %p69 = scmp.eq.s32.totalorder %s20, 3
      %p70 = por %p68, %p69
      %p71 = scmp.ne.s32.totalorder %s60, %s61
      %p72 = scmp.eq.s32.totalorder %s20, 0
      %p73 = por %p71, %p72
      %p74 = scmp.ne.s32.totalorder %s60, %s61
      %p75 = scmp.eq.s32.totalorder %s21, 3
      %p76 = por %p74, %p75
      %p78 = scmp.ne.s32.totalorder %s61, %s77
      %p79 = scmp.eq.s32.totalorder %s21, 0
      %p80 = por %p78, %p79
      %s81 = ssub.s32 %s23, %s44
      %p82 = scmp.eq.s32.totalorder %s81, 0
      %s84 = sadd.s32 %s83, 1
      %s85 = scalar_select %p82, %s83, %s84
      %p88 = pneg %p82
      %p89 = scmp.eq.s32.totalorder %s15, 3
      %p90 = por %p88, %p89
      %p91 = scmp.ne.s32.totalorder %s83, %s86
      %p92 = scmp.eq.s32.totalorder %s15, 0
      %p93 = por %p91, %p92
      %p94 = scmp.ne.s32.totalorder %s83, %s86
      %p95 = scmp.eq.s32.totalorder %s20, 3
      %p96 = por %p94, %p95
      %p97 = scmp.ne.s32.totalorder %s86, %s87
      %p98 = scmp.eq.s32.totalorder %s20, 0
      %p99 = por %p97, %p98
      %p100 = scmp.ne.s32.totalorder %s86, %s87
      %p101 = scmp.eq.s32.totalorder %s21, 3
      %p102 = por %p100, %p101
      %p104 = scmp.ne.s32.totalorder %s87, %s103
      %p105 = scmp.eq.s32.totalorder %s21, 0
      %p106 = por %p104, %p105
      %s107 = smul.u32 %s25, %s24
      %s108 = smul.u32 %s36, %s40
      %s109 = ssub.s32 %s22, %s48
      %s110 = ssub.s32 %s23, %s44
      %s111 = sor.u32 %s109, %s110
      %s112 = ssub.s32 %s107, %s108
      %s113 = sor.u32 %s111, %s112
      %p114 = scmp.eq.s32.totalorder %s113, 0
      %s116 = sadd.s32 %s115, 1
      %s117 = scalar_select %p114, %s115, %s116
      %p120 = pneg %p114
      %p121 = scmp.eq.s32.totalorder %s15, 3
      %p122 = por %p120, %p121
      %p123 = scmp.ne.s32.totalorder %s115, %s118
      %p124 = scmp.eq.s32.totalorder %s15, 0
      %p125 = por %p123, %p124
      %p126 = scmp.ne.s32.totalorder %s115, %s118
      %p127 = scmp.eq.s32.totalorder %s20, 3
      %p128 = por %p126, %p127
      %p129 = scmp.ne.s32.totalorder %s118, %s119
      %p130 = scmp.eq.s32.totalorder %s20, 0
      %p131 = por %p129, %p130
      %p132 = scmp.ne.s32.totalorder %s118, %s119
      %p133 = scmp.eq.s32.totalorder %s21, 3
      %p134 = por %p132, %p133
      %p136 = scmp.ne.s32.totalorder %s119, %s135
      %p137 = scmp.eq.s32.totalorder %s21, 0
      %p138 = por %p136, %p137
      %p139 = scmp.le.s32.totalorder 1, %s15
      %p140 = scmp.lt.s32.totalorder %s15, 5
      %p141 = pnand %p139, %p140
      %p142 = pneg %p141
      // Predicated region
      $region9: #{tpu_custom_call.1} parent=5 // pred_check
        _
      $region10: #{tpu_custom_call.1} parent=5 // pred_check_branch
        %144 = sbr.rel (%p141) target = $region12
      $region11: #{tpu_custom_call.1} parent=5 // pred_region
        %s145 = ssub.s32 %s15, 1
        // Predicated region
        $region13: #{tpu_custom_call.1} parent=11 // pred_check
          %p146 = pneg %p99
        $region14: #{tpu_custom_call.1} parent=11 // pred_check_branch
          %148 = sbr.rel (%p146) target = $region16
        $region15: #{tpu_custom_call.1} parent=11 // pred_region
          %s150 = ssub.s32 64, 64
          %151 = vsyncadd [#allocation9], %s150
          %s152 = smul.addr %s27, 64
          %s153 = scalar_lea.hbm %s1, %s152
          %s155 = sshll.u32 [#allocation8], 4
          %s156 = int_to_ptr.vmem [resolvable:$true] %s155
          %158 = dma.hbm_to_vmem [thread:$0]  %s153, 64, %s156, [#allocation9]
        $region16: #{tpu_custom_call.1} parent=11 // pred_fallthru
          _
      $region12: #{tpu_custom_call.1} parent=5 // pred_fallthru
        _
      %p159 = scmp.lt.s32.totalorder %s15, 4
      // Predicated region
      $region17: #{tpu_custom_call.1} parent=5 // pred_check
        %p160 = pneg %p159
      $region18: #{tpu_custom_call.1} parent=5 // pred_check_branch
        %162 = sbr.rel (%p160) target = $region20
      $region19: #{tpu_custom_call.1} parent=5 // pred_region
        // Predicated region
        $region21: #{tpu_custom_call.1} parent=19 // pred_check
          %p163 = pneg %p67
        $region22: #{tpu_custom_call.1} parent=19 // pred_check_branch
          %165 = sbr.rel (%p163) target = $region24
        $region23: #{tpu_custom_call.1} parent=19 // pred_region
          %s166 = sand.u32 %s57, 1
          %s167 = scalar_lea.sflag [#allocation6], %s166
          %s168 = sand.u32 %s57, 1
          %s169 = smul.addr %s168, 8
          %s170 = scalar_lea.vmem [#allocation5], %s169
          %s171 = ssub.s32 1, %s24
          %s172 = smul.u32 %s25, %s171
          %s174 = ssub.s32 128, 128
          %175 = vsyncadd %s167, %s174
          %s176 = smul.addr %s22, 2
          %s177 = sadd.s32 %s172, %s176
          %s178 = smul.addr %s177, 64
          %s179 = scalar_lea.hbm %s0, %s178
          %s180 = sshll.u32 %s170, 4
          %s181 = int_to_ptr.vmem [resolvable:$true] %s180
          %186 = dma.hbm_to_vmem [thread:$0]  %s179, 128, %s181, %s167, 64, 64, 4
        $region24: #{tpu_custom_call.1} parent=19 // pred_fallthru
          _
      $region20: #{tpu_custom_call.1} parent=5 // pred_fallthru
        _
      %p187 = scmp.le.s32.totalorder 1, %s15
      %p188 = scmp.lt.s32.totalorder %s15, 5
      %p189 = pnand %p187, %p188
      %p190 = pneg %p189
      // Predicated region
      $region25: #{tpu_custom_call.1} parent=5 // pred_check
        _
      $region26: #{tpu_custom_call.1} parent=5 // pred_check_branch
        %192 = sbr.rel (%p189) target = $region28
      $region27: #{tpu_custom_call.1} parent=5 // pred_region
        %s193 = ssub.s32 %s15, 1
        %s194 = sand.u32 %s60, 1
        %s195 = scalar_lea.sflag [#allocation6], %s194
        %s196 = sand.u32 %s60, 1
        %s197 = smul.addr %s196, 8
        %s198 = scalar_lea.vmem [#allocation5], %s197
        // Predicated region
        $region29: #{tpu_custom_call.1} parent=27 // pred_check
          %p199 = pneg %p73
        $region30: #{tpu_custom_call.1} parent=27 // pred_check_branch
          %201 = sbr.rel (%p199) target = $region32
        $region31: #{tpu_custom_call.1} parent=27 // pred_region
          %202 = dma.done %s195, 128
        $region32: #{tpu_custom_call.1} parent=27 // pred_fallthru
          _
        // Predicated region
        $region33: #{tpu_custom_call.1} parent=27 // pred_check
          %p203 = pneg %p99
        $region34: #{tpu_custom_call.1} parent=27 // pred_check_branch
          %205 = sbr.rel (%p203) target = $region36
        $region35: #{tpu_custom_call.1} parent=27 // pred_region
          %206 = dma.done [#allocation9], 64
        $region36: #{tpu_custom_call.1} parent=27 // pred_fallthru
          _
        %s207 = sand.u32 %s60, 1
        %s208 = scalar_lea.sflag [#allocation6], %s207
        %s209 = sand.u32 %s60, 1
        %s210 = smul.addr %s209, 8
        %s211 = scalar_lea.vmem [#allocation5], %s210
        %p212 = pneg %p73
        %p213 = pneg %p70
        %p214 = pneg %p99
        %p215 = pneg %p96
        %p216 = pneg %p131
        %p217 = pneg %p128
        %s218 = sand.u32 %s118, 1
        %s219 = scalar_lea.sflag [#allocation7], %s218
        %s220 = sand.u32 %s118, 1
        %s221 = smul.addr %s220, 8
        %s222 = scalar_lea.vmem [#allocation10], %s221
        %s223 = ssub.s32 1, %s28
        %s224 = smul.u32 %s29, %s223
        %s225 = smul.u32 %s29, %s28
        %s227 = smul.u32 %s29, 128
        %p228 = scmp.eq.s32.totalorder %s28, 0
        %p229 = scmp.eq.s32.totalorder %s29, 0
        %p230 = pnand %p228, %p229
        %p231 = pneg %p230
        // Predicated region
        $region37: #{tpu_custom_call.1} parent=27 // pred_check
          _
        $region38: #{tpu_custom_call.1} parent=27 // pred_check_branch
          %233 = sbr.rel (%p230) target = $region40
        $region39: #{tpu_custom_call.1} parent=27 // pred_region
          %vm234 = vcmask 7168
          %235 = vst.msk [vmem:[#allocation3] sm:$0xff] %vm234, 0.0
          %236 = vst.msk [vmem:[#allocation4] sm:$0xff] %vm234, 0.0
        $region40: #{tpu_custom_call.1} parent=27 // pred_fallthru
          _
        // Predicated region
        $region41: #{tpu_custom_call.1} parent=27 // pred_check
          %p237 = pneg %p228
        $region42: #{tpu_custom_call.1} parent=27 // pred_check_branch
          %239 = sbr.rel (%p237) target = $region44
        $region43: #{tpu_custom_call.1} parent=27 // pred_region
          %v240 = vld [vmem:[#allocation8] sm:$0xf]
          %v241 = vld [vmem:[%s198] sm:$0xf]
          %v242 = vld [vmem:[%s198 + $0x4] sm:$0xf]
          %v245 = vunpack.c.l.b16 %v241
          %v246 = vunpack.c.l.b16 %v242
          %v247 = vpack.c.b16 %v246, %v245
          %vm249 = vcmask 130048
          %v251 = vsel %vm249, %v240, 0
          %253 = vmatprep.subr.bf16.mxu0 0
          %254 = vmatpush1.bf16.msra.mxu0 %v247
          %255 = vmatprep.subr.bf16.mxu0 0
          %256 = vmatpush1.bf16.msra.mxu0 0
          %257 = vmatprep.subr.bf16.mxu0 0
          %258 = vmatpush1.bf16.msra.mxu0 0
          %259 = vmatprep.subr.bf16.mxu0 0
          %260 = vmatpush1.bf16.msra.mxu0 0
          %261 = vmatprep.subr.bf16.mxu0 0
          %262 = vmatpush1.bf16.msra.mxu0 0
          %263 = vmatprep.subr.bf16.mxu0 0
          %264 = vmatpush1.bf16.msra.mxu0 0
          %265 = vmatprep.subr.bf16.mxu0 0
          %266 = vmatpush1.bf16.msra.mxu0 0
          %267 = vmatprep.subr.bf16.mxu0 0
          %268 = vmatpush1.bf16.msra.mxu0 0
          %269 = vmatprep.subr.bf16.mxu0 0
          %270 = vmatpush1.bf16.msra.mxu0 0
          %271 = vmatprep.subr.bf16.mxu0 0
          %272 = vmatpush1.bf16.msra.mxu0 0
          %273 = vmatprep.subr.bf16.mxu0 0
          %274 = vmatpush1.bf16.msra.mxu0 0
          %275 = vmatprep.subr.bf16.mxu0 0
          %276 = vmatpush1.bf16.msra.mxu0 0
          %277 = vmatprep.subr.bf16.mxu0 0
          %278 = vmatpush1.bf16.msra.mxu0 0
          %279 = vmatprep.subr.bf16.mxu0 0
          %280 = vmatpush1.bf16.msra.mxu0 0
          %281 = vmatprep.subr.bf16.mxu0 0
          %282 = vmatpush1.bf16.msra.mxu0 0
          %283 = vmatprep.subr.bf16.mxu0 0
          %284 = vmatpush1.bf16.msra.mxu0 0
          %285 = vmatprep.mubr.bf16.mxu0 0
          %286 = vmatmul.mubr.bf16.gmra.mrb[0].mxu0 %v251
          %v287 = vpop.f32.mrb[0].mxu0
          %v288 = vadd.f32 0.0, %v287
          %v289 = vpop.f32.mrb[0].mxu0
          %v290 = vpop.f32.mrb[0].mxu0
          %v291 = vpop.f32.mrb[0].mxu0
          %292 = vdwg.mxu0
          %v293 = vld [vmem:[#allocation3] sm:$0xff]
          %294 = vadd.xlane.f32.xlu0 %v288
          %v295 = vpop.xlane.xlu0 %294
          %v296 = vadd.f32 %v293, %v295
          %vm297 = vcmask 7168
          %298 = vst.msk [vmem:[#allocation3] sm:$0xff] %vm297, %v296
          %v299 = vld [vmem:[#allocation4] sm:$0xff]
          %v300 = vmul.f32 %v288, %v288
          %301 = vadd.xlane.f32.xlu0 %v300
          %v302 = vpop.xlane.xlu0 %301
          %v303 = vadd.f32 %v299, %v302
          %304 = vst.msk [vmem:[#allocation4] sm:$0xff] %vm297, %v303
          %v305 = vpack.c.bf16 %v288, %v288
          %s306 = sshra.s32 %s227, 7
          %s307 = sand.u32 %s227, 127
          %s308 = smul.addr %s306, 4
          %s309 = scalar_lea.vmem [#allocation2], %s308
          %310 = vst [vmem:[%s309] sm:$0xf] %v305
        $region44: #{tpu_custom_call.1} parent=27 // pred_fallthru
          _
        %p311 = scmp.eq.s32.totalorder %s28, 1
        %p312 = pnand %p311, %p229
        %p313 = pneg %p312
        // Predicated region
        $region45: #{tpu_custom_call.1} parent=27 // pred_check
          _
        $region46: #{tpu_custom_call.1} parent=27 // pred_check_branch
          %315 = sbr.rel (%p312) target = $region48
        $region47: #{tpu_custom_call.1} parent=27 // pred_region
          %v316 = vld [vmem:[#allocation3] sm:$0xff]
          %v317 = vmul.f32 %v316, 0.015625
          %v318 = vld [vmem:[#allocation4] sm:$0xff]
          %v319 = vmul.f32 %v318, 0.015625
          %v320 = vmul.f32 %v317, %v317
          %v321 = vsub.f32 %v319, %v320
          %v322 = vmax.f32 %v321, 0.0
          %vm323 = vcmask 7168
          %324 = vst.msk [vmem:[#allocation3] sm:$0xff] %vm323, %v317
          %v325 = vadd.f32 %v322, 1e-05
          %v326 = vrsqrt.pop %v325
          %327 = vst.msk [vmem:[#allocation4] sm:$0xff] %vm323, %v326
        $region48: #{tpu_custom_call.1} parent=27 // pred_fallthru
          _
        // Predicated region
        $region49: #{tpu_custom_call.1} parent=27 // pred_check
          %p328 = pneg %p311
        $region50: #{tpu_custom_call.1} parent=27 // pred_check_branch
          %330 = sbr.rel (%p328) target = $region52
        $region51: #{tpu_custom_call.1} parent=27 // pred_region
          %s331 = sshra.s32 %s227, 7
          %s332 = sand.u32 %s227, 127
          %s333 = smul.addr %s331, 4
          %s334 = scalar_lea.vmem [#allocation2], %s333
          %v335 = vld [vmem:[%s334] sm:$0xf]
          %v336 = vunpack.c.l.bf16 %v335
          %v337 = vld [vmem:[#allocation3] sm:$0xff]
          %339 = vset.pattern.permute.xlu0 0
          %340 = vperm.xlu0 %339, %v337
          %v341 = vpop.permute.xlu0 %340
          %v343 = vsub.f32 %v336, %v341
          %v344 = vld [vmem:[#allocation4] sm:$0xff]
          %346 = vset.pattern.permute.xlu0 0
          %347 = vperm.xlu0 %346, %v344
          %v348 = vpop.permute.xlu0 %347
          %v350 = vmul.f32 %v343, %v348
          %vm351 = vcmp.ge.f32.partialorder %v350, 0.0
          %v352 = vmul.f32 %v350, 0.2
          %v353 = vsel %vm351, %v350, %v352
          %354 = vst [vmem:[%s222] sm:$0xff] %v353
        $region52: #{tpu_custom_call.1} parent=27 // pred_fallthru
          _
        %s355 = sand.u32 %s118, 1
        %s356 = scalar_lea.sflag [#allocation7], %s355
        %s357 = sand.u32 %s118, 1
        %s358 = smul.addr %s357, 8
        %s359 = scalar_lea.vmem [#allocation10], %s358
        // Predicated region
        $region53: #{tpu_custom_call.1} parent=27 // pred_check
          %p360 = pneg %p128
        $region54: #{tpu_custom_call.1} parent=27 // pred_check_branch
          %362 = sbr.rel (%p360) target = $region56
        $region55: #{tpu_custom_call.1} parent=27 // pred_region
          %s363 = smul.u32 %s29, %s28
          %s365 = ssub.s32 128, 128
          %366 = vsyncadd %s356, %s365
          %s367 = sadd.s32 %s363, %s27
          %s368 = sadd.s32 %s367, %s26
          %s369 = smul.addr %s368, 128
          %s370 = scalar_lea.hbm %s2, %s369
          %s372 = sshll.u32 %s359, 4
          %s373 = int_to_ptr.vmem [resolvable:$true] %s372
          %375 = dma.vmem_to_hbm [thread:$0]  %s373, 128, %s370, %s356
        $region56: #{tpu_custom_call.1} parent=27 // pred_fallthru
          _
      $region28: #{tpu_custom_call.1} parent=5 // pred_fallthru
        _
      %p376 = scmp.le.s32.totalorder 2, %s15
      // Predicated region
      $region57: #{tpu_custom_call.1} parent=5 // pred_check
        %p377 = pneg %p376
      $region58: #{tpu_custom_call.1} parent=5 // pred_check_branch
        %379 = sbr.rel (%p377) target = $region60
      $region59: #{tpu_custom_call.1} parent=5 // pred_region
        %s380 = ssub.s32 %s15, 2
        // Predicated region
        $region61: #{tpu_custom_call.1} parent=59 // pred_check
          %p381 = pneg %p134
        $region62: #{tpu_custom_call.1} parent=59 // pred_check_branch
          %383 = sbr.rel (%p381) target = $region64
        $region63: #{tpu_custom_call.1} parent=59 // pred_region
          %s384 = sand.u32 %s119, 1
          %s385 = scalar_lea.sflag [#allocation7], %s384
          %s386 = sand.u32 %s119, 1
          %s387 = smul.addr %s386, 8
          %s388 = scalar_lea.vmem [#allocation10], %s387
          %389 = dma.done %s385, 128
        $region64: #{tpu_custom_call.1} parent=59 // pred_fallthru
          _
      $region60: #{tpu_custom_call.1} parent=5 // pred_fallthru
        _
    $region6: #{tpu_custom_call.1} parent=1 // loop_footer
      %s19 = sadd.s32 1, %s15
    $region7: #{tpu_custom_call.1} parent=1 // loop_footer_branch
      %14 = sbr.rel target = $region3
    $region8: #{tpu_custom_call.1} parent=1 // loop_exit
      _
    %390 = vsyncpa [#allocation6], 1
    %s391 = scalar_lea.sflag [#allocation6], 1
    %392 = vsyncpa %s391, 1
    %393 = vsyncpa [#allocation9], 1
    %394 = vsyncpa [#allocation7], 1
    %s395 = scalar_lea.sflag [#allocation7], 1
    %396 = vsyncpa %s395, 1

</llo_original>
